<compile_context>
chip_gen: v7x
topology: tpu7x:2x2x1
jax: 0.10.0
libtpu: 0.0.40
codegen_flags: <defaults>
</compile_context>

<pallas_src>
import jax
import jax.numpy as jnp
from jax import lax
from jax.experimental import pallas as pl
from jax.experimental.pallas import tpu as pltpu

MODEL_CONFIG = {
    "pose_input_dim": 34,          # 33 landmark features + 1 height value
    "hidden_dim": 32,
    "dropout_rate": 0.2,
    "target_measurements": ["chest", "waist", "hips", "inseam"],
}
BN_EPS = 1e-5


# ---------------------------------------------------------------------------
# Kernel: one batch tile, all weights VMEM-resident, three wide matmuls.
# Rows are independent -> safe with partial (masked) last batch block.
# ---------------------------------------------------------------------------
def body_measurement_kernel(
    lm_ref, ht_ref,
    w1lm_ref, w1h_ref, b1_ref,
    w2_ref, b2_ref,
    w3_ref, b3_ref,
    w4_ref, b4_ref,
    out_ref,
):
    cdt = w2_ref.dtype  # compute dtype of matmul operands (f32 or bf16)

    # Linear(D_in, 64) + ReLU  (height column as rank-1 update: no concat copy)
    h1 = jnp.dot(lm_ref[...], w1lm_ref[...], preferred_element_type=jnp.float32)
    h1 = h1 + ht_ref[...] * w1h_ref[...] + b1_ref[...]
    h1 = jnp.maximum(h1, 0.0).astype(cdt)
    # (BatchNorm1d(64) folded into w2/b2; Dropout = identity in eval)

    # Linear(64, H) + ReLU
    h2 = jnp.dot(h1, w2_ref[...], preferred_element_type=jnp.float32) + b2_ref[...]
    h2 = jnp.maximum(h2, 0.0).astype(cdt)
    # (BatchNorm1d(H) folded into fused head weights w3/b3)

    # All M heads' first Linear(H, 32) fused into one (H, M*32) matmul + ReLU
    h3 = jnp.dot(h2, w3_ref[...], preferred_element_type=jnp.float32) + b3_ref[...]
    h3 = jnp.maximum(h3, 0.0).astype(cdt)

    # All M heads' final Linear(32, 1) fused as one block-diagonal (M*32, M) matmul
    out_ref[...] = (
        jnp.dot(h3, w4_ref[...], preferred_element_type=jnp.float32) + b4_ref[...]
    ).astype(out_ref.dtype)


# ---------------------------------------------------------------------------
# Param prep: fold BN into the following Linear, fuse head weights.
# ---------------------------------------------------------------------------
def fuse_params(params):
    d_in = params["w1"].shape[0]

    # BN1 (after ReLU, before Linear2):  y = h1*s1 + (beta1 - m1*s1)
    s1 = params["g1"] * lax.rsqrt(params["v1"] + BN_EPS)          # (1, 64)
    shift1 = params["beta1"] - params["m1"] * s1                   # (1, 64)
    w2f = s1.reshape(-1, 1) * params["w2"]                         # (64, H)
    b2f = params["b2"] + shift1 @ params["w2"]                     # (1, H)

    # BN2 (after ReLU, before head Linear):  y = h2*s2 + (beta2 - m2*s2)
    s2 = params["g2"] * lax.rsqrt(params["v2"] + BN_EPS)           # (1, H)
    shift2 = params["beta2"] - params["m2"] * s2                   # (1, H)

    # Fuse the M heads' first Linear: (M, H, 32) -> (H, M*32)
    M, H, K = params["w3"].shape
    w3_wide = jnp.transpose(params["w3"], (1, 0, 2)).reshape(H, M * K)
    b3_wide = params["b3"].reshape(1, M * K)
    w3f = s2.reshape(-1, 1) * w3_wide                              # (H, M*32)
    b3f = b3_wide + shift2 @ w3_wide                               # (1, M*32)

    # Fuse the M heads' final Linear into one block-diagonal matrix: (M*32, M)
    w4f = jnp.zeros((M * K, M), jnp.float32)
    for m in range(M):
        w4f = w4f.at[m * K:(m + 1) * K, m].set(params["w4"][m, :, 0])

    return {
        "w1_lm": params["w1"][: d_in - 1],   # (33, 64)
        "w1_h": params["w1"][d_in - 1:],     # (1, 64)
        "b1": params["b1"],                  # (1, 64)
        "w2": w2f, "b2": b2f,
        "w3": w3f, "b3": b3f,
        "w4": w4f, "b4": params["b4"],       # (1, M)
    }


def _round_up(n, m):
    return ((n + m - 1) // m) * m


# ---------------------------------------------------------------------------
# Wrapper: batch grid (possibly partial last block), resident weights.
# ---------------------------------------------------------------------------
def body_measurement_forward_raw(fused, landmarks, height, *, block_b=2048,
                                 use_bf16=False):
    """Returns the fused (B, M) output array."""
    in_dt = jnp.bfloat16 if use_bf16 else jnp.float32
    landmarks = landmarks.astype(in_dt)
    height = height.astype(in_dt)

    B, D_lm = landmarks.shape
    M = fused["b4"].shape[1]

    # Matmul weights in compute dtype; biases stay f32 (added to f32 accumulators).
    w = {
        "w1_lm": fused["w1_lm"].astype(in_dt),
        "w1_h": fused["w1_h"].astype(in_dt),
        "b1": fused["b1"].astype(jnp.float32),
        "w2": fused["w2"].astype(in_dt),
        "b2": fused["b2"].astype(jnp.float32),
        "w3": fused["w3"].astype(in_dt),
        "b3": fused["b3"].astype(jnp.float32),
        "w4": fused["w4"].astype(in_dt),
        "b4": fused["b4"].astype(jnp.float32),
    }
    weight_order = ("w1_lm", "w1_h", "b1", "w2", "b2", "w3", "b3", "w4", "b4")

    # Batch tile: multiple of 8 sublanes, big enough to amortize per-step
    # overhead, capped so large batches always give >= 2 grid steps
    # (v7x has 2 TCs sharing the "parallel" axis).  No padding of B: the last
    # block may be partial; OOB reads are garbage and OOB writes are dropped,
    # which is safe because every op here is row-independent.
    TB = max(8, min(_round_up(block_b, 8), _round_up(pl.cdiv(B, 2), 8)))
    grid = (pl.cdiv(B, TB),)

    # Rough VMEM footprint: double-buffered in/out blocks + f32 temporaries + weights.
    in_bytes = 2 if use_bf16 else 4
    est_vmem = 2 * TB * (D_lm + 1 + M) * in_bytes
    est_vmem += TB * (64 + 64 + 128 + 128) * 4
    est_vmem += 256 * 1024
    vmem_limit = None
    if est_vmem > (30 << 20):
        # Stay well under v7x's 64 MiB physical VMEM; v5e/v6e have 128 MiB.
        vmem_limit = min(int(est_vmem * 2), 96 << 20)

    def batch_spec(cols):
        return pl.BlockSpec((TB, cols), lambda i: (i, 0))

    def weight_spec(arr):
        return pl.BlockSpec(arr.shape, lambda i: (0, 0))   # VMEM-resident across steps

    out = pl.pallas_call(
        body_measurement_kernel,
        out_shape=jax.ShapeDtypeStruct((B, M), jnp.float32),
        grid=grid,
        in_specs=[batch_spec(D_lm), batch_spec(1)]
        + [weight_spec(w[k]) for k in weight_order],
        out_specs=batch_spec(M),
        compiler_params=pltpu.CompilerParams(
            dimension_semantics=("parallel",),
            vmem_limit_bytes=vmem_limit),
    )(landmarks, height, *[w[k] for k in weight_order])

    return out


def body_measurement_forward(fused, landmarks, height, *, block_b=2048,
                             use_bf16=False):
    """Matches the PyTorch module's dict-of-(B,1) outputs."""
    out = body_measurement_forward_raw(
        fused, landmarks, height, block_b=block_b, use_bf16=use_bf16)
    return {
        name: out[:, i:i + 1]
        for i, name in enumerate(MODEL_CONFIG["target_measurements"])
    }


# ---------------------------------------------------------------------------
# Deterministic init mimicking the PyTorch module's parameter shapes.
# ---------------------------------------------------------------------------
def init_params(key):
    d_in = MODEL_CONFIG["pose_input_dim"]
    hid = MODEL_CONFIG["hidden_dim"]
    n_meas = len(MODEL_CONFIG["target_measurements"])
    keys = jax.random.split(key, 16)

    def unif(k, shape, fan_in):
        bound = 1.0 / jnp.sqrt(float(fan_in))
        return jax.random.uniform(k, shape, jnp.float32, -bound, bound)

    return {
        # encoder layer 1: Linear(d_in, 64) + BatchNorm1d(64)
        "w1": unif(keys[0], (d_in, 64), d_in),
        "b1": unif(keys[1], (1, 64), d_in),
        "g1": 1.0 + 0.1 * jax.random.normal(keys[2], (1, 64), jnp.float32),
        "beta1": 0.1 * jax.random.normal(keys[3], (1, 64), jnp.float32),
        "m1": 0.1 * jax.random.normal(keys[4], (1, 64), jnp.float32),
        "v1": 0.5 + jnp.abs(jax.random.normal(keys[5], (1, 64), jnp.float32)),
        # encoder layer 2: Linear(64, hid) + BatchNorm1d(hid)
        "w2": unif(keys[6], (64, hid), 64),
        "b2": unif(keys[7], (1, hid), 64),
        "g2": 1.0 + 0.1 * jax.random.normal(keys[8], (1, hid), jnp.float32),
        "beta2": 0.1 * jax.random.normal(keys[9], (1, hid), jnp.float32),
        "m2": 0.1 * jax.random.normal(keys[10], (1, hid), jnp.float32),
        "v2": 0.5 + jnp.abs(jax.random.normal(keys[11], (1, hid), jnp.float32)),
        # measurement heads, stacked: Linear(hid, 32) -> Linear(32, 1)
        "w3": unif(keys[12], (n_meas, hid, 32), hid),
        "b3": unif(keys[13], (n_meas, 32), hid),
        "w4": unif(keys[14], (n_meas, 32, 1), 32),
        "b4": unif(keys[15], (1, n_meas), 32),
    }


def reference_forward(params, landmarks, height):
    """Pure-JAX reference matching the PyTorch eval-mode forward (no folding)."""
    x = jnp.concatenate([landmarks, height], axis=1)
    h1 = jax.nn.relu(x @ params["w1"] + params["b1"])
    h1 = (h1 - params["m1"]) / jnp.sqrt(params["v1"] + BN_EPS) * params["g1"] + params["beta1"]
    h2 = jax.nn.relu(h1 @ params["w2"] + params["b2"])
    feat = (h2 - params["m2"]) / jnp.sqrt(params["v2"] + BN_EPS) * params["g2"] + params["beta2"]
    outs = {}
    for i, name in enumerate(MODEL_CONFIG["target_measurements"]):
        hm = jax.nn.relu(feat @ params["w3"][i] + params["b3"][i])
        outs[name] = hm @ params["w4"][i] + params["b4"][:, i:i + 1]
    return outs


if __name__ == "__main__":
    key = jax.random.PRNGKey(0)
    k_param, k_lm, k_h, k_lm2, k_h2 = jax.random.split(key, 5)

    landmark_dim = MODEL_CONFIG["pose_input_dim"] - 1  # 33
    params = init_params(k_param)
    fused = fuse_params(params)

    # --- small batch (single grid step) ---
    batch = 8
    landmarks = jax.random.normal(k_lm, (batch, landmark_dim), jnp.float32)
    height = jax.random.uniform(k_h, (batch, 1), jnp.float32, 1.5, 2.0)

    out = body_measurement_forward(fused, landmarks, height)
    out = jax.tree_util.tree_map(jax.block_until_ready, out)
    ref = reference_forward(params, landmarks, height)
    for name in MODEL_CONFIG["target_measurements"]:
        assert out[name].shape == (batch, 1), out[name].shape
        assert jnp.allclose(out[name], ref[name], atol=2e-4, rtol=2e-4), (
            name, out[name], ref[name])

    # --- ragged batch (exercises multi-step grid + partial last block, no pad) ---
    batch2 = 300
    landmarks2 = jax.random.normal(k_lm2, (batch2, landmark_dim), jnp.float32)
    height2 = jax.random.uniform(k_h2, (batch2, 1), jnp.float32, 1.5, 2.0)

    out2 = body_measurement_forward(fused, landmarks2, height2)
    out2 = jax.tree_util.tree_map(jax.block_until_ready, out2)
    ref2 = reference_forward(params, landmarks2, height2)
    for name in MODEL_CONFIG["target_measurements"]:
        assert out2[name].shape == (batch2, 1), out2[name].shape
        assert jnp.allclose(out2[name], ref2[name], atol=2e-4, rtol=2e-4), name

    # --- bf16 compute path (halves HBM / MXU traffic; looser tolerance) ---
    out3 = body_measurement_forward(fused, landmarks2, height2, use_bf16=True)
    out3 = jax.tree_util.tree_map(jax.block_until_ready, out3)
    for name in MODEL_CONFIG["target_measurements"]:
        assert out3[name].shape == (batch2, 1), out3[name].shape
        assert jnp.all(jnp.isfinite(out3[name])), name
        assert jnp.allclose(out3[name], ref2[name], atol=1e-1, rtol=5e-2), name

    print("KERNEL_OK")
</pallas_src>

<mosaic_0001>
module attributes {stable_mosaic.version = 11 : i64} {
  func.func @body_measurement_kernel(%arg0: i32, %arg1: memref<8x33xf32, #tpu.memory_space<vmem>>, %arg2: memref<8x1xf32, #tpu.memory_space<vmem>>, %arg3: memref<33x64xf32, #tpu.memory_space<vmem>>, %arg4: memref<1x64xf32, #tpu.memory_space<vmem>>, %arg5: memref<1x64xf32, #tpu.memory_space<vmem>>, %arg6: memref<64x32xf32, #tpu.memory_space<vmem>>, %arg7: memref<1x32xf32, #tpu.memory_space<vmem>>, %arg8: memref<32x128xf32, #tpu.memory_space<vmem>>, %arg9: memref<1x128xf32, #tpu.memory_space<vmem>>, %arg10: memref<128x4xf32, #tpu.memory_space<vmem>>, %arg11: memref<1x4xf32, #tpu.memory_space<vmem>>, %arg12: memref<8x4xf32, #tpu.memory_space<vmem>>) attributes {dimension_semantics = [#tpu.dimension_semantics<parallel>], iteration_bounds = array<i64: 1>, scalar_prefetch = 0 : i64, scratch_operands = 0 : i64, tpu.core_type = #tpu.core_type<tc>, window_params = [{transform_indices = @transform_0, window_bounds = array<i64: 8, 33>}, {transform_indices = @transform_1, window_bounds = array<i64: 8, 1>}, {pipeline_mode = #tpu.pipeline_mode<synchronous>, transform_indices = @transform_2, window_bounds = array<i64: 33, 64>}, {pipeline_mode = #tpu.pipeline_mode<synchronous>, transform_indices = @transform_3, window_bounds = array<i64: 1, 64>}, {pipeline_mode = #tpu.pipeline_mode<synchronous>, transform_indices = @transform_4, window_bounds = array<i64: 1, 64>}, {pipeline_mode = #tpu.pipeline_mode<synchronous>, transform_indices = @transform_5, window_bounds = array<i64: 64, 32>}, {pipeline_mode = #tpu.pipeline_mode<synchronous>, transform_indices = @transform_6, window_bounds = array<i64: 1, 32>}, {pipeline_mode = #tpu.pipeline_mode<synchronous>, transform_indices = @transform_7, window_bounds = array<i64: 32, 128>}, {pipeline_mode = #tpu.pipeline_mode<synchronous>, transform_indices = @transform_8, window_bounds = array<i64: 1, 128>}, {pipeline_mode = #tpu.pipeline_mode<synchronous>, transform_indices = @transform_9, window_bounds = array<i64: 128, 4>}, {pipeline_mode = #tpu.pipeline_mode<synchronous>, transform_indices = @transform_10, window_bounds = array<i64: 1, 4>}, {transform_indices = @transform_11, window_bounds = array<i64: 8, 4>}]} {
    %c0 = arith.constant 0 : index
    %c0_0 = arith.constant 0 : index
    %0 = vector.load %arg1[%c0, %c0_0] : memref<8x33xf32, #tpu.memory_space<vmem>>, vector<8x33xf32>
    %c0_1 = arith.constant 0 : index
    %c0_2 = arith.constant 0 : index
    %1 = vector.load %arg3[%c0_1, %c0_2] : memref<33x64xf32, #tpu.memory_space<vmem>>, vector<33x64xf32>
    %cst = arith.constant dense<0.000000e+00> : vector<8x64xf32>
    %2 = tpu.matmul %0, %1, %cst {dimension_numbers = #tpu.dot_dimension_numbers<[1], [0], [0], [1], [0, 0, 1, 1], [], []>} : vector<8x33xf32>, vector<33x64xf32>, vector<8x64xf32> -> vector<8x64xf32>
    %c0_3 = arith.constant 0 : index
    %c0_4 = arith.constant 0 : index
    %3 = vector.load %arg2[%c0_3, %c0_4] : memref<8x1xf32, #tpu.memory_space<vmem>>, vector<8x1xf32>
    %c0_5 = arith.constant 0 : index
    %c0_6 = arith.constant 0 : index
    %4 = vector.load %arg4[%c0_5, %c0_6] : memref<1x64xf32, #tpu.memory_space<vmem>>, vector<1x64xf32>
    %5 = vector.broadcast %3 : vector<8x1xf32> to vector<8x64xf32>
    %6 = vector.broadcast %4 : vector<1x64xf32> to vector<8x64xf32>
    %7 = arith.mulf %5, %6 : vector<8x64xf32>
    %8 = arith.addf %2, %7 : vector<8x64xf32>
    %c0_7 = arith.constant 0 : index
    %c0_8 = arith.constant 0 : index
    %9 = vector.load %arg5[%c0_7, %c0_8] : memref<1x64xf32, #tpu.memory_space<vmem>>, vector<1x64xf32>
    %10 = vector.broadcast %9 : vector<1x64xf32> to vector<8x64xf32>
    %11 = arith.addf %8, %10 : vector<8x64xf32>
    %cst_9 = arith.constant 0.000000e+00 : f32
    %12 = vector.broadcast %cst_9 : f32 to vector<8x64xf32>
    %13 = arith.maximumf %11, %12 : vector<8x64xf32>
    %c0_10 = arith.constant 0 : index
    %c0_11 = arith.constant 0 : index
    %14 = vector.load %arg6[%c0_10, %c0_11] : memref<64x32xf32, #tpu.memory_space<vmem>>, vector<64x32xf32>
    %cst_12 = arith.constant dense<0.000000e+00> : vector<8x32xf32>
    %15 = tpu.matmul %13, %14, %cst_12 {dimension_numbers = #tpu.dot_dimension_numbers<[1], [0], [0], [1], [0, 0, 1, 1], [], []>} : vector<8x64xf32>, vector<64x32xf32>, vector<8x32xf32> -> vector<8x32xf32>
    %c0_13 = arith.constant 0 : index
    %c0_14 = arith.constant 0 : index
    %16 = vector.load %arg7[%c0_13, %c0_14] : memref<1x32xf32, #tpu.memory_space<vmem>>, vector<1x32xf32>
    %17 = vector.broadcast %16 : vector<1x32xf32> to vector<8x32xf32>
    %18 = arith.addf %15, %17 : vector<8x32xf32>
    %cst_15 = arith.constant 0.000000e+00 : f32
    %19 = vector.broadcast %cst_15 : f32 to vector<8x32xf32>
    %20 = arith.maximumf %18, %19 : vector<8x32xf32>
    %c0_16 = arith.constant 0 : index
    %c0_17 = arith.constant 0 : index
    %21 = vector.load %arg8[%c0_16, %c0_17] : memref<32x128xf32, #tpu.memory_space<vmem>>, vector<32x128xf32>
    %cst_18 = arith.constant dense<0.000000e+00> : vector<8x128xf32>
    %22 = tpu.matmul %20, %21, %cst_18 {dimension_numbers = #tpu.dot_dimension_numbers<[1], [0], [0], [1], [0, 0, 1, 1], [], []>} : vector<8x32xf32>, vector<32x128xf32>, vector<8x128xf32> -> vector<8x128xf32>
    %c0_19 = arith.constant 0 : index
    %c0_20 = arith.constant 0 : index
    %23 = vector.load %arg9[%c0_19, %c0_20] : memref<1x128xf32, #tpu.memory_space<vmem>>, vector<1x128xf32>
    %24 = vector.broadcast %23 : vector<1x128xf32> to vector<8x128xf32>
    %25 = arith.addf %22, %24 : vector<8x128xf32>
    %cst_21 = arith.constant 0.000000e+00 : f32
    %26 = vector.broadcast %cst_21 : f32 to vector<8x128xf32>
    %27 = arith.maximumf %25, %26 : vector<8x128xf32>
    %c0_22 = arith.constant 0 : index
    %c0_23 = arith.constant 0 : index
    %28 = vector.load %arg10[%c0_22, %c0_23] : memref<128x4xf32, #tpu.memory_space<vmem>>, vector<128x4xf32>
    %cst_24 = arith.constant dense<0.000000e+00> : vector<8x4xf32>
    %29 = tpu.matmul %27, %28, %cst_24 {dimension_numbers = #tpu.dot_dimension_numbers<[1], [0], [0], [1], [0, 0, 1, 1], [], []>} : vector<8x128xf32>, vector<128x4xf32>, vector<8x4xf32> -> vector<8x4xf32>
    %c0_25 = arith.constant 0 : index
    %c0_26 = arith.constant 0 : index
    %30 = vector.load %arg11[%c0_25, %c0_26] : memref<1x4xf32, #tpu.memory_space<vmem>>, vector<1x4xf32>
    %31 = vector.broadcast %30 : vector<1x4xf32> to vector<8x4xf32>
    %32 = arith.addf %29, %31 : vector<8x4xf32>
    %c0_27 = arith.constant 0 : index
    %c0_28 = arith.constant 0 : index
    %33 = vector.load %arg12[%c0_27, %c0_28] : memref<8x4xf32, #tpu.memory_space<vmem>>, vector<8x4xf32>
    tpu.vector_store %arg12[%c0_27, %c0_28], %32 {strides = array<i32>} : memref<8x4xf32, #tpu.memory_space<vmem>>, vector<8x4xf32>,
    return
  }
  func.func @transform_0(%arg0: i32) -> (i32, i32) {
    %c0_i32 = arith.constant 0 : i32
    %c0_i32_0 = arith.constant 0 : i32
    return %arg0, %c0_i32 : i32, i32
  }
  func.func @transform_1(%arg0: i32) -> (i32, i32) {
    %c0_i32 = arith.constant 0 : i32
    %c0_i32_0 = arith.constant 0 : i32
    return %arg0, %c0_i32 : i32, i32
  }
  func.func @transform_2(%arg0: i32) -> (i32, i32) {
    %c0_i32 = arith.constant 0 : i32
    %c0_i32_0 = arith.constant 0 : i32
    %c0_i32_1 = arith.constant 0 : i32
    return %c0_i32, %c0_i32_0 : i32, i32
  }
  func.func @transform_3(%arg0: i32) -> (i32, i32) {
    %c0_i32 = arith.constant 0 : i32
    %c0_i32_0 = arith.constant 0 : i32
    %c0_i32_1 = arith.constant 0 : i32
    return %c0_i32, %c0_i32_0 : i32, i32
  }
  func.func @transform_4(%arg0: i32) -> (i32, i32) {
    %c0_i32 = arith.constant 0 : i32
    %c0_i32_0 = arith.constant 0 : i32
    %c0_i32_1 = arith.constant 0 : i32
    return %c0_i32, %c0_i32_0 : i32, i32
  }
  func.func @transform_5(%arg0: i32) -> (i32, i32) {
    %c0_i32 = arith.constant 0 : i32
    %c0_i32_0 = arith.constant 0 : i32
    %c0_i32_1 = arith.constant 0 : i32
    return %c0_i32, %c0_i32_0 : i32, i32
  }
  func.func @transform_6(%arg0: i32) -> (i32, i32) {
    %c0_i32 = arith.constant 0 : i32
    %c0_i32_0 = arith.constant 0 : i32
    %c0_i32_1 = arith.constant 0 : i32
    return %c0_i32, %c0_i32_0 : i32, i32
  }
  func.func @transform_7(%arg0: i32) -> (i32, i32) {
    %c0_i32 = arith.constant 0 : i32
    %c0_i32_0 = arith.constant 0 : i32
    %c0_i32_1 = arith.constant 0 : i32
    return %c0_i32, %c0_i32_0 : i32, i32
  }
  func.func @transform_8(%arg0: i32) -> (i32, i32) {
    %c0_i32 = arith.constant 0 : i32
    %c0_i32_0 = arith.constant 0 : i32
    %c0_i32_1 = arith.constant 0 : i32
    return %c0_i32, %c0_i32_0 : i32, i32
  }
  func.func @transform_9(%arg0: i32) -> (i32, i32) {
    %c0_i32 = arith.constant 0 : i32
    %c0_i32_0 = arith.constant 0 : i32
    %c0_i32_1 = arith.constant 0 : i32
    return %c0_i32, %c0_i32_0 : i32, i32
  }
  func.func @transform_10(%arg0: i32) -> (i32, i32) {
    %c0_i32 = arith.constant 0 : i32
    %c0_i32_0 = arith.constant 0 : i32
    %c0_i32_1 = arith.constant 0 : i32
    return %c0_i32, %c0_i32_0 : i32, i32
  }
  func.func @transform_11(%arg0: i32) -> (i32, i32) {
    %c0_i32 = arith.constant 0 : i32
    %c0_i32_0 = arith.constant 0 : i32
    return %arg0, %c0_i32 : i32, i32
  }
}

</mosaic_0001>

<llo_original>
// kernel: tpu_custom_call.1
$region0: #{tpu_custom_call.1}
  #allocation0 [shape = 'u32[]', space=smem, size = 0x4, offset = 0x4, fixed_abs, tag = 'smem constant byte address 0x4 - core index']
  #allocation1 [shape = 'u32[144,128]{1,0:T(1,128)}', space=vmem, size = 0x12000, scoped, tag = 'internal scratch']
  %s0 = inlined_call_operand.vmem [shape: f32[8,33], index: 0, kind: input, shape index: {}]
  %s1 = inlined_call_operand.vmem [shape: f32[8,1], index: 1, kind: input, shape index: {}]
  %s2 = inlined_call_operand.vmem [shape: f32[33,64], index: 2, kind: input, shape index: {}]
  %s3 = inlined_call_operand.vmem [shape: f32[1,64], index: 3, kind: input, shape index: {}]
  %s4 = inlined_call_operand.vmem [shape: f32[1,64], index: 4, kind: input, shape index: {}]
  %s5 = inlined_call_operand.vmem [shape: f32[64,32], index: 5, kind: input, shape index: {}]
  %s6 = inlined_call_operand.vmem [shape: f32[1,32], index: 6, kind: input, shape index: {}]
  %s7 = inlined_call_operand.vmem [shape: f32[32,128], index: 7, kind: input, shape index: {}]
  %s8 = inlined_call_operand.vmem [shape: f32[1,128], index: 8, kind: input, shape index: {}]
  %s9 = inlined_call_operand.vmem [shape: f32[128,4], index: 9, kind: input, shape index: {}]
  %s10 = inlined_call_operand.vmem [shape: f32[1,4], index: 10, kind: input, shape index: {}]
  %s11 = inlined_call_operand.vmem [shape: f32[8,4], index: 11, kind: output, shape index: {}]
  %s12 = sld [smem:[#allocation0]]
  $region54: #{tpu_custom_call.1} parent=0
    _
  %s14 = ssub.s32 1, %s12
  %s15 = scalar_select 0, %s14, %s12
  // Predicated region
  $region2: #{tpu_custom_call.1} parent=0 // pred_check
    _
  $region3: #{tpu_custom_call.1} parent=0 // pred_check_branch
    %17 = sbr.rel (0) target = $region5
  $region4: #{tpu_custom_call.1} parent=0 // pred_region
    _
  $region5: #{tpu_custom_call.1} parent=0 // pred_fallthru
    _
  // Predicated region
  $region6: #{tpu_custom_call.1} parent=0 // pred_check
    _
  $region7: #{tpu_custom_call.1} parent=0 // pred_check_branch
    %19 = sbr.rel (0) target = $region9
  $region8: #{tpu_custom_call.1} parent=0 // pred_region
    _
  $region9: #{tpu_custom_call.1} parent=0 // pred_fallthru
    _
  // Predicated region
  $region10: #{tpu_custom_call.1} parent=0 // pred_check
    _
  $region11: #{tpu_custom_call.1} parent=0 // pred_check_branch
    %21 = sbr.rel (0) target = $region13
  $region12: #{tpu_custom_call.1} parent=0 // pred_region
    _
  $region13: #{tpu_custom_call.1} parent=0 // pred_fallthru
    _
  // Predicated region
  $region14: #{tpu_custom_call.1} parent=0 // pred_check
    _
  $region15: #{tpu_custom_call.1} parent=0 // pred_check_branch
    %23 = sbr.rel (0) target = $region17
  $region16: #{tpu_custom_call.1} parent=0 // pred_region
    _
  $region17: #{tpu_custom_call.1} parent=0 // pred_fallthru
    _
  // Predicated region
  $region18: #{tpu_custom_call.1} parent=0 // pred_check
    _
  $region19: #{tpu_custom_call.1} parent=0 // pred_check_branch
    %25 = sbr.rel (0) target = $region21
  $region20: #{tpu_custom_call.1} parent=0 // pred_region
    _
  $region21: #{tpu_custom_call.1} parent=0 // pred_fallthru
    _
  // Predicated region
  $region22: #{tpu_custom_call.1} parent=0 // pred_check
    _
  $region23: #{tpu_custom_call.1} parent=0 // pred_check_branch
    %27 = sbr.rel (0) target = $region25
  $region24: #{tpu_custom_call.1} parent=0 // pred_region
    _
  $region25: #{tpu_custom_call.1} parent=0 // pred_fallthru
    _
  // Predicated region
  $region26: #{tpu_custom_call.1} parent=0 // pred_check
    _
  $region27: #{tpu_custom_call.1} parent=0 // pred_check_branch
    %29 = sbr.rel (0) target = $region29
  $region28: #{tpu_custom_call.1} parent=0 // pred_region
    _
  $region29: #{tpu_custom_call.1} parent=0 // pred_fallthru
    _
  // Predicated region
  $region30: #{tpu_custom_call.1} parent=0 // pred_check
    _
  $region31: #{tpu_custom_call.1} parent=0 // pred_check_branch
    %31 = sbr.rel (0) target = $region33
  $region32: #{tpu_custom_call.1} parent=0 // pred_region
    _
  $region33: #{tpu_custom_call.1} parent=0 // pred_fallthru
    _
  // Predicated region
  $region34: #{tpu_custom_call.1} parent=0 // pred_check
    _
  $region35: #{tpu_custom_call.1} parent=0 // pred_check_branch
    %33 = sbr.rel (0) target = $region37
  $region36: #{tpu_custom_call.1} parent=0 // pred_region
    _
  $region37: #{tpu_custom_call.1} parent=0 // pred_fallthru
    _
  // Predicated region
  $region38: #{tpu_custom_call.1} parent=0 // pred_check
    _
  $region39: #{tpu_custom_call.1} parent=0 // pred_check_branch
    %35 = sbr.rel (0) target = $region41
  $region40: #{tpu_custom_call.1} parent=0 // pred_region
    _
  $region41: #{tpu_custom_call.1} parent=0 // pred_fallthru
    _
  // Predicated region
  $region42: #{tpu_custom_call.1} parent=0 // pred_check
    _
  $region43: #{tpu_custom_call.1} parent=0 // pred_check_branch
    %37 = sbr.rel (0) target = $region45
  $region44: #{tpu_custom_call.1} parent=0 // pred_region
    _
  $region45: #{tpu_custom_call.1} parent=0 // pred_fallthru
    _
  %v38 = vld [vmem:[%s0] sm:$0xff]
  %v39 = vld [vmem:[%s2] sm:$0xff]
  %v40 = vld [vmem:[%s2 + $0x8] sm:$0xff]
  %v41 = vld [vmem:[%s2 + $0x10] sm:$0xff]
  %v42 = vld [vmem:[%s2 + $0x18] sm:$0xff]
  %v43 = vld [vmem:[%s2 + $0x20] sm:$0x1]
  %v44 = vld [vmem:[%s1] sm:$0xff]
  %v45 = vld [vmem:[%s3] sm:$0x1]
  %47 = vset.pattern.permute.xlu0 0
  %48 = vperm.xlu0 %47, %v44
  %v49 = vpop.permute.xlu0 %48
  %v52 = vlaneseq
  %v53 = vshrl.u32 %v52, 7
  %v54 = vsub.s32 0, %v53
  %v55 = vrot.slane %v45, %v54
  %v57 = vmul.f32 %v49, %v55
  %vm58 = vcmask 269312
  %v60 = vsel %vm58, %v38, 0
  %vm62 = vcmask 1040384
  %v64 = vsel %vm62, %v43, 0
  %66 = vmatprep.subr.mxu0 0.0
  %67 = vmatpush1.msra.mxu0 %v39
  %68 = vmatprep.subr.mxu0 0.0
  %69 = vmatpush1.msra.mxu0 %v40
  %70 = vmatprep.subr.mxu0 0.0
  %71 = vmatpush1.msra.mxu0 %v41
  %72 = vmatprep.subr.mxu0 0.0
  %73 = vmatpush1.msra.mxu0 %v42
  %74 = vmatprep.subr.mxu0 0.0
  %75 = vmatpush1.msra.mxu0 %v64
  %76 = vmatprep.subr.mxu0 0.0
  %77 = vmatpush1.msra.mxu0 0.0
  %78 = vmatprep.subr.mxu0 0.0
  %79 = vmatpush1.msra.mxu0 0.0
  %80 = vmatprep.subr.mxu0 0.0
  %81 = vmatpush1.msra.mxu0 0.0
  %82 = vmatprep.subr.mxu0 0.0
  %83 = vmatpush1.msra.mxu0 0.0
  %84 = vmatprep.subr.mxu0 0.0
  %85 = vmatpush1.msra.mxu0 0.0
  %86 = vmatprep.subr.mxu0 0.0
  %87 = vmatpush1.msra.mxu0 0.0
  %88 = vmatprep.subr.mxu0 0.0
  %89 = vmatpush1.msra.mxu0 0.0
  %90 = vmatprep.subr.mxu0 0.0
  %91 = vmatpush1.msra.mxu0 0.0
  %92 = vmatprep.subr.mxu0 0.0
  %93 = vmatpush1.msra.mxu0 0.0
  %94 = vmatprep.subr.mxu0 0.0
  %95 = vmatpush1.msra.mxu0 0.0
  %96 = vmatprep.subr.mxu0 0.0
  %97 = vmatpush1.msra.mxu0 0.0
  %98 = vmatprep.subr.mxu0 0.0
  %99 = vmatpush1.msra.mxu0 0.0
  %100 = vmatprep.subr.mxu0 0.0
  %101 = vmatpush1.msra.mxu0 0.0
  %102 = vmatprep.subr.mxu0 0.0
  %103 = vmatpush1.msra.mxu0 0.0
  %104 = vmatprep.subr.mxu0 0.0
  %105 = vmatpush1.msra.mxu0 0.0
  %106 = vmatprep.subr.mxu0 0.0
  %107 = vmatpush1.msra.mxu0 0.0
  %108 = vmatprep.subr.mxu0 0.0
  %109 = vmatpush1.msra.mxu0 0.0
  %110 = vmatprep.subr.mxu0 0.0
  %111 = vmatpush1.msra.mxu0 0.0
  %112 = vmatprep.subr.mxu0 0.0
  %113 = vmatpush1.msra.mxu0 0.0
  %114 = vmatprep.subr.mxu0 0.0
  %115 = vmatpush1.msra.mxu0 0.0
  %116 = vmatprep.subr.mxu0 0.0
  %117 = vmatpush1.msra.mxu0 0.0
  %118 = vmatprep.subr.mxu0 0.0
  %119 = vmatpush1.msra.mxu0 0.0
  %120 = vmatprep.subr.mxu0 0.0
  %121 = vmatpush1.msra.mxu0 0.0
  %122 = vmatprep.subr.mxu0 0.0
  %123 = vmatpush1.msra.mxu0 0.0
  %124 = vmatprep.subr.mxu0 0.0
  %125 = vmatpush1.msra.mxu0 0.0
  %126 = vmatprep.subr.mxu0 0.0
  %127 = vmatpush1.msra.mxu0 0.0
  %128 = vmatprep.subr.mxu0 0.0
  %129 = vmatpush1.msra.mxu0 0.0
  %130 = vmatprep.mubr.f32.mxu0 0.0
  %131 = vmatmul.mubr.f32.gmra.mrb[0].mxu0 %v60
  %v132 = vpop.f32.mrb[0].mxu0
  %v133 = vadd.f32 %v57, %v132
  %v134 = vpop.f32.mrb[0].mxu0
  %135 = vdwg.mxu0
  %v136 = vld [vmem:[%s4] sm:$0x1]
  %v138 = vlaneseq
  %v139 = vshrl.u32 %v138, 7
  %v140 = vsub.s32 0, %v139
  %v141 = vrot.slane %v136, %v140
  %v143 = vadd.f32 %v133, %v141
  %v144 = vmax.f32 %v143, 0.0
  %v145 = vld [vmem:[%s5] sm:$0xff]
  %v146 = vld [vmem:[%s5 + $0x8] sm:$0xff]
  %v147 = vld [vmem:[%s5 + $0x10] sm:$0xff]
  %v148 = vld [vmem:[%s5 + $0x18] sm:$0xff]
  %v149 = vld [vmem:[%s5 + $0x20] sm:$0xff]
  %v150 = vld [vmem:[%s5 + $0x28] sm:$0xff]
  %v151 = vld [vmem:[%s5 + $0x30] sm:$0xff]
  %v152 = vld [vmem:[%s5 + $0x38] sm:$0xff]
  %v153 = vld [vmem:[%s6] sm:$0x1]
  %v155 = vlaneseq
  %v156 = vshrl.u32 %v155, 7
  %v157 = vsub.s32 0, %v156
  %v158 = vrot.slane %v153, %v157
  %vm160 = vcmask 523264
  %v162 = vsel %vm160, %v144, 0
  %164 = vmatprep.subr.mxu0 0.0
  %165 = vmatpush1.msra.mxu0 %v145
  %166 = vmatprep.subr.mxu0 0.0
  %167 = vmatpush1.msra.mxu0 %v146
  %168 = vmatprep.subr.mxu0 0.0
  %169 = vmatpush1.msra.mxu0 %v147
  %170 = vmatprep.subr.mxu0 0.0
  %171 = vmatpush1.msra.mxu0 %v148
  %172 = vmatprep.subr.mxu0 0.0
  %173 = vmatpush1.msra.mxu0 %v149
  %174 = vmatprep.subr.mxu0 0.0
  %175 = vmatpush1.msra.mxu0 %v150
  %176 = vmatprep.subr.mxu0 0.0
  %177 = vmatpush1.msra.mxu0 %v151
  %178 = vmatprep.subr.mxu0 0.0
  %179 = vmatpush1.msra.mxu0 %v152
  %180 = vmatprep.subr.mxu0 0.0
  %181 = vmatpush1.msra.mxu0 0.0
  %182 = vmatprep.subr.mxu0 0.0
  %183 = vmatpush1.msra.mxu0 0.0
  %184 = vmatprep.subr.mxu0 0.0
  %185 = vmatpush1.msra.mxu0 0.0
  %186 = vmatprep.subr.mxu0 0.0
  %187 = vmatpush1.msra.mxu0 0.0
  %188 = vmatprep.subr.mxu0 0.0
  %189 = vmatpush1.msra.mxu0 0.0
  %190 = vmatprep.subr.mxu0 0.0
  %191 = vmatpush1.msra.mxu0 0.0
  %192 = vmatprep.subr.mxu0 0.0
  %193 = vmatpush1.msra.mxu0 0.0
  %194 = vmatprep.subr.mxu0 0.0
  %195 = vmatpush1.msra.mxu0 0.0
  %196 = vmatprep.subr.mxu0 0.0
  %197 = vmatpush1.msra.mxu0 0.0
  %198 = vmatprep.subr.mxu0 0.0
  %199 = vmatpush1.msra.mxu0 0.0
  %200 = vmatprep.subr.mxu0 0.0
  %201 = vmatpush1.msra.mxu0 0.0
  %202 = vmatprep.subr.mxu0 0.0
  %203 = vmatpush1.msra.mxu0 0.0
  %204 = vmatprep.subr.mxu0 0.0
  %205 = vmatpush1.msra.mxu0 0.0
  %206 = vmatprep.subr.mxu0 0.0
  %207 = vmatpush1.msra.mxu0 0.0
  %208 = vmatprep.subr.mxu0 0.0
  %209 = vmatpush1.msra.mxu0 0.0
  %210 = vmatprep.subr.mxu0 0.0
  %211 = vmatpush1.msra.mxu0 0.0
  %212 = vmatprep.subr.mxu0 0.0
  %213 = vmatpush1.msra.mxu0 0.0
  %214 = vmatprep.subr.mxu0 0.0
  %215 = vmatpush1.msra.mxu0 0.0
  %216 = vmatprep.subr.mxu0 0.0
  %217 = vmatpush1.msra.mxu0 0.0
  %218 = vmatprep.subr.mxu0 0.0
  %219 = vmatpush1.msra.mxu0 0.0
  %220 = vmatprep.subr.mxu0 0.0
  %221 = vmatpush1.msra.mxu0 0.0
  %222 = vmatprep.subr.mxu0 0.0
  %223 = vmatpush1.msra.mxu0 0.0
  %224 = vmatprep.subr.mxu0 0.0
  %225 = vmatpush1.msra.mxu0 0.0
  %226 = vmatprep.subr.mxu0 0.0
  %227 = vmatpush1.msra.mxu0 0.0
  %228 = vmatprep.mubr.f32.mxu0 0.0
  %229 = vmatmul.mubr.f32.gmra.mrb[0].mxu0 %v162
  %v230 = vpop.f32.mrb[0].mxu0
  %v231 = vadd.f32 %v158, %v230
  %v232 = vpop.f32.mrb[0].mxu0
  %233 = vdwg.mxu0
  %v234 = vmax.f32 %v231, 0.0
  %v235 = vld [vmem:[%s7] sm:$0xff]
  %v236 = vld [vmem:[%s7 + $0x8] sm:$0xff]
  %v237 = vld [vmem:[%s7 + $0x10] sm:$0xff]
  %v238 = vld [vmem:[%s7 + $0x18] sm:$0xff]
  %v239 = vld [vmem:[%s8] sm:$0x1]
  %v241 = vlaneseq
  %v242 = vshrl.u32 %v241, 7
  %v243 = vsub.s32 0, %v242
  %v244 = vrot.slane %v239, %v243
  %vm246 = vcmask 261120
  %v248 = vsel %vm246, %v234, 0
  %250 = vmatprep.subr.mxu0 0.0
  %251 = vmatpush1.msra.mxu0 %v235
  %252 = vmatprep.subr.mxu0 0.0
  %253 = vmatpush1.msra.mxu0 %v236
  %254 = vmatprep.subr.mxu0 0.0
  %255 = vmatpush1.msra.mxu0 %v237
  %256 = vmatprep.subr.mxu0 0.0
  %257 = vmatpush1.msra.mxu0 %v238
  %258 = vmatprep.subr.mxu0 0.0
  %259 = vmatpush1.msra.mxu0 0.0
  %260 = vmatprep.subr.mxu0 0.0
  %261 = vmatpush1.msra.mxu0 0.0
  %262 = vmatprep.subr.mxu0 0.0
  %263 = vmatpush1.msra.mxu0 0.0
  %264 = vmatprep.subr.mxu0 0.0
  %265 = vmatpush1.msra.mxu0 0.0
  %266 = vmatprep.subr.mxu0 0.0
  %267 = vmatpush1.msra.mxu0 0.0
  %268 = vmatprep.subr.mxu0 0.0
  %269 = vmatpush1.msra.mxu0 0.0
  %270 = vmatprep.subr.mxu0 0.0
  %271 = vmatpush1.msra.mxu0 0.0
  %272 = vmatprep.subr.mxu0 0.0
  %273 = vmatpush1.msra.mxu0 0.0
  %274 = vmatprep.subr.mxu0 0.0
  %275 = vmatpush1.msra.mxu0 0.0
  %276 = vmatprep.subr.mxu0 0.0
  %277 = vmatpush1.msra.mxu0 0.0
  %278 = vmatprep.subr.mxu0 0.0
  %279 = vmatpush1.msra.mxu0 0.0
  %280 = vmatprep.subr.mxu0 0.0
  %281 = vmatpush1.msra.mxu0 0.0
  %282 = vmatprep.subr.mxu0 0.0
  %283 = vmatpush1.msra.mxu0 0.0
  %284 = vmatprep.subr.mxu0 0.0
  %285 = vmatpush1.msra.mxu0 0.0
  %286 = vmatprep.subr.mxu0 0.0
  %287 = vmatpush1.msra.mxu0 0.0
  %288 = vmatprep.subr.mxu0 0.0
  %289 = vmatpush1.msra.mxu0 0.0
  %290 = vmatprep.subr.mxu0 0.0
  %291 = vmatpush1.msra.mxu0 0.0
  %292 = vmatprep.subr.mxu0 0.0
  %293 = vmatpush1.msra.mxu0 0.0
  %294 = vmatprep.subr.mxu0 0.0
  %295 = vmatpush1.msra.mxu0 0.0
  %296 = vmatprep.subr.mxu0 0.0
  %297 = vmatpush1.msra.mxu0 0.0
  %298 = vmatprep.subr.mxu0 0.0
  %299 = vmatpush1.msra.mxu0 0.0
  %300 = vmatprep.subr.mxu0 0.0
  %301 = vmatpush1.msra.mxu0 0.0
  %302 = vmatprep.subr.mxu0 0.0
  %303 = vmatpush1.msra.mxu0 0.0
  %304 = vmatprep.subr.mxu0 0.0
  %305 = vmatpush1.msra.mxu0 0.0
  %306 = vmatprep.subr.mxu0 0.0
  %307 = vmatpush1.msra.mxu0 0.0
  %308 = vmatprep.subr.mxu0 0.0
  %309 = vmatpush1.msra.mxu0 0.0
  %310 = vmatprep.subr.mxu0 0.0
  %311 = vmatpush1.msra.mxu0 0.0
  %312 = vmatprep.subr.mxu0 0.0
  %313 = vmatpush1.msra.mxu0 0.0
  %314 = vmatprep.mubr.f32.mxu0 0.0
  %315 = vmatmul.mubr.f32.gmra.mrb[0].mxu0 %v248
  %v316 = vpop.f32.mrb[0].mxu0
  %v317 = vadd.f32 %v244, %v316
  %v318 = vpop.f32.mrb[0].mxu0
  %319 = vdwg.mxu0
  %v320 = vmax.f32 %v317, 0.0
  %v321 = vld [vmem:[%s9] sm:$0xff]
  %v322 = vld [vmem:[%s9 + $0x8] sm:$0xff]
  %v323 = vld [vmem:[%s9 + $0x10] sm:$0xff]
  %v324 = vld [vmem:[%s9 + $0x18] sm:$0xff]
  %v325 = vld [vmem:[%s9 + $0x20] sm:$0xff]
  %v326 = vld [vmem:[%s9 + $0x28] sm:$0xff]
  %v327 = vld [vmem:[%s9 + $0x30] sm:$0xff]
  %v328 = vld [vmem:[%s9 + $0x38] sm:$0xff]
  %v329 = vld [vmem:[%s9 + $0x40] sm:$0xff]
  %v330 = vld [vmem:[%s9 + $0x48] sm:$0xff]
  %v331 = vld [vmem:[%s9 + $0x50] sm:$0xff]
  %v332 = vld [vmem:[%s9 + $0x58] sm:$0xff]
  %v333 = vld [vmem:[%s9 + $0x60] sm:$0xff]
  %v334 = vld [vmem:[%s9 + $0x68] sm:$0xff]
  %v335 = vld [vmem:[%s9 + $0x70] sm:$0xff]
  %v336 = vld [vmem:[%s9 + $0x78] sm:$0xff]
  %v337 = vld [vmem:[%s10] sm:$0x1]
  %v339 = vlaneseq
  %v340 = vshrl.u32 %v339, 7
  %v341 = vsub.s32 0, %v340
  %v342 = vrot.slane %v337, %v341
  %344 = vmatprep.subr.mxu0 0.0
  %345 = vmatpush1.msra.mxu0 %v321
  %346 = vmatprep.subr.mxu0 0.0
  %347 = vmatpush1.msra.mxu0 %v322
  %348 = vmatprep.subr.mxu0 0.0
  %349 = vmatpush1.msra.mxu0 %v323
  %350 = vmatprep.subr.mxu0 0.0
  %351 = vmatpush1.msra.mxu0 %v324
  %352 = vmatprep.subr.mxu0 0.0
  %353 = vmatpush1.msra.mxu0 %v325
  %354 = vmatprep.subr.mxu0 0.0
  %355 = vmatpush1.msra.mxu0 %v326
  %356 = vmatprep.subr.mxu0 0.0
  %357 = vmatpush1.msra.mxu0 %v327
  %358 = vmatprep.subr.mxu0 0.0
  %359 = vmatpush1.msra.mxu0 %v328
  %360 = vmatprep.subr.mxu0 0.0
  %361 = vmatpush1.msra.mxu0 %v329
  %362 = vmatprep.subr.mxu0 0.0
  %363 = vmatpush1.msra.mxu0 %v330
  %364 = vmatprep.subr.mxu0 0.0
  %365 = vmatpush1.msra.mxu0 %v331
  %366 = vmatprep.subr.mxu0 0.0
  %367 = vmatpush1.msra.mxu0 %v332
  %368 = vmatprep.subr.mxu0 0.0
  %369 = vmatpush1.msra.mxu0 %v333
  %370 = vmatprep.subr.mxu0 0.0
  %371 = vmatpush1.msra.mxu0 %v334
  %372 = vmatprep.subr.mxu0 0.0
  %373 = vmatpush1.msra.mxu0 %v335
  %374 = vmatprep.subr.mxu0 0.0
  %375 = vmatpush1.msra.mxu0 %v336
  %376 = vmatprep.subr.mxu0 0.0
  %377 = vmatpush1.msra.mxu0 0.0
  %378 = vmatprep.subr.mxu0 0.0
  %379 = vmatpush1.msra.mxu0 0.0
  %380 = vmatprep.subr.mxu0 0.0
  %381 = vmatpush1.msra.mxu0 0.0
  %382 = vmatprep.subr.mxu0 0.0
  %383 = vmatpush1.msra.mxu0 0.0
  %384 = vmatprep.subr.mxu0 0.0
  %385 = vmatpush1.msra.mxu0 0.0
  %386 = vmatprep.subr.mxu0 0.0
  %387 = vmatpush1.msra.mxu0 0.0
  %388 = vmatprep.subr.mxu0 0.0
  %389 = vmatpush1.msra.mxu0 0.0
  %390 = vmatprep.subr.mxu0 0.0
  %391 = vmatpush1.msra.mxu0 0.0
  %392 = vmatprep.subr.mxu0 0.0
  %393 = vmatpush1.msra.mxu0 0.0
  %394 = vmatprep.subr.mxu0 0.0
  %395 = vmatpush1.msra.mxu0 0.0
  %396 = vmatprep.subr.mxu0 0.0
  %397 = vmatpush1.msra.mxu0 0.0
  %398 = vmatprep.subr.mxu0 0.0
  %399 = vmatpush1.msra.mxu0 0.0
  %400 = vmatprep.subr.mxu0 0.0
  %401 = vmatpush1.msra.mxu0 0.0
  %402 = vmatprep.subr.mxu0 0.0
  %403 = vmatpush1.msra.mxu0 0.0
  %404 = vmatprep.subr.mxu0 0.0
  %405 = vmatpush1.msra.mxu0 0.0
  %406 = vmatprep.subr.mxu0 0.0
  %407 = vmatpush1.msra.mxu0 0.0
  %408 = vmatprep.mubr.f32.mxu0 0.0
  %409 = vmatmul.mubr.f32.gmra.mrb[0].mxu0 %v320
  %v410 = vpop.f32.mrb[0].mxu0
  %v411 = vadd.f32 %v342, %v410
  %v412 = vpop.f32.mrb[0].mxu0
  %413 = vdwg.mxu0
  %vm414 = vcmask 31744
  %415 = vst.msk [vmem:[%s11] sm:$0xff] %vm414, %v411
  // Predicated region
  $region46: #{tpu_custom_call.1} parent=0 // pred_check
    _
  $region47: #{tpu_custom_call.1} parent=0 // pred_check_branch
    %417 = sbr.rel (0) target = $region49
  $region48: #{tpu_custom_call.1} parent=0 // pred_region
    _
  $region49: #{tpu_custom_call.1} parent=0 // pred_fallthru
    _
  // Predicated region
  $region50: #{tpu_custom_call.1} parent=0 // pred_check
    _
  $region51: #{tpu_custom_call.1} parent=0 // pred_check_branch
    %419 = sbr.rel (0) target = $region53
  $region52: #{tpu_custom_call.1} parent=0 // pred_region
    _
  $region53: #{tpu_custom_call.1} parent=0 // pred_fallthru
    _

</llo_original>
